<compile_context>
chip_gen: v6e
topology: v6e:2x2x1
jax: 0.10.0
libtpu: 0.0.40
codegen_flags: <defaults>
</compile_context>

<pallas_src>
import math

import jax
import jax.numpy as jnp
import numpy as np
from jax.experimental import pallas as pl
from jax.experimental.pallas import tpu as pltpu


_VMEM_TILE_BUDGET = 16 * 1024 * 1024   # target bytes for the pipelined blocks (safe on v5e/v6e/v7x)
_VMEM_LIMIT_BYTES = 48 * 1024 * 1024   # scoped-VMEM cap for Mosaic (< v7x 64 MiB physical)
_TARGET_LANES = 512                    # aim for ~512-lane write-once output chunk groups


def _make_ola_gather_kernel(frame_shift, nframes, frame_size, nchunks, group):
    """Write-once overlap-add: one lane-dense store per output chunk group."""
    R = frame_size // frame_shift       # overlap factor (frames covering each position)

    def kernel(x_ref, inv_ref, out_ref):
        # x_ref:   (TB, nframes*frame_size)  native dtype, lane-dense
        # inv_ref: (1, sig_length)           f32, resident across grid steps
        # out_ref: (TB, sig_length)          native dtype
        for g0 in range(0, nchunks, group):
            g1 = min(g0 + group, nchunks)
            pieces = []
            for c in range(g0, g1):          # one frame_shift-wide output chunk
                acc = None
                for r in range(R):           # bounded unroll: overlap_factor terms
                    i = c - r
                    if 0 <= i < nframes:
                        col = i * frame_size + r * frame_shift
                        v = x_ref[:, col:col + frame_shift].astype(jnp.float32)
                        acc = v if acc is None else acc + v
                pieces.append(acc)
            blk = pieces[0] if len(pieces) == 1 else jnp.concatenate(pieces, axis=-1)
            s = g0 * frame_shift
            w = (g1 - g0) * frame_shift
            out_ref[:, s:s + w] = (blk * inv_ref[:, s:s + w]).astype(out_ref.dtype)

    return kernel


def _make_ola_scatter_kernel(frame_shift, nframes, frame_size, sig_length):
    """General fallback (frame_size % frame_shift != 0): scatter RMW into an f32 scratch."""

    def kernel(x_ref, inv_ref, out_ref, acc_ref):
        acc_ref[...] = jnp.zeros_like(acc_ref)
        for i in range(nframes):
            s = i * frame_shift
            col = i * frame_size
            acc_ref[:, s:s + frame_size] += x_ref[:, col:col + frame_size].astype(jnp.float32)
        out_ref[...] = (acc_ref[...] * inv_ref[...]).astype(out_ref.dtype)

    return kernel


def _choose_batch_tile(B, bytes_per_row):
    """Largest batch tile fitting the VMEM budget; >=2 grid steps when B is large; avoid padding."""
    max_rows = max(8, int(_VMEM_TILE_BUDGET // max(1, bytes_per_row)))
    if B >= 16:
        # keep >= 2 grid steps so the "parallel" axis can be sharded across TensorCores
        max_rows = min(max_rows, max(8, B // 2))
    if B <= max_rows:
        return B, B                      # single block == full batch dim, no padding needed
    cand = (max_rows // 8) * 8
    while cand >= 8:
        if B % cand == 0:                # divides B exactly -> no jnp.pad HBM pass
            return cand, B
        cand -= 8
    tb = max(8, (max_rows // 8) * 8)     # last resort: pad the batch
    b_pad = ((B + tb - 1) // tb) * tb
    return tb, b_pad


def torch_ola(inputs, frame_shift=256):
    """Overlap-and-add.  inputs: (..., nframes, frame_size) -> (..., sig_length)."""
    lead = inputs.shape[:-2]
    nframes = int(inputs.shape[-2])
    frame_size = int(inputs.shape[-1])
    shift = int(frame_shift)
    sig_length = (nframes - 1) * shift + frame_size

    B = int(np.prod(lead, dtype=np.int64)) if lead else 1
    # Collapse the frame axes so the input block is 2-D and lane-dense (no sublane/lane
    # padding when frame_size < 128); keep the native dtype (no wrapper f32 cast pass).
    x = inputs.reshape(B, nframes * frame_size)

    # Batch-invariant normalisation: precompute 1/coverage-count once on the host and
    # pass it as a tiny resident input (its block index never changes).
    cnt = np.zeros(sig_length, dtype=np.float64)
    for i in range(nframes):
        cnt[i * shift:i * shift + frame_size] += 1.0
    with np.errstate(divide="ignore"):
        # inf where cnt == 0 (only possible when shift > frame_size) -> 0*inf = NaN,
        # matching the PyTorch 0/0 behaviour.
        inv_np = (1.0 / cnt).astype(np.float32)
    inv_cnt = jnp.asarray(inv_np.reshape(1, sig_length))

    divisible = shift > 0 and frame_size % shift == 0

    itemsize = np.dtype(inputs.dtype).itemsize
    bytes_per_row = 2 * (nframes * frame_size * itemsize + sig_length * itemsize)  # dbl-buffered in+out
    if not divisible:
        bytes_per_row += sig_length * 4                      # fallback f32 scratch accumulator
    TB, B_pad = _choose_batch_tile(B, bytes_per_row)
    if B_pad != B:
        x = jnp.pad(x, ((0, B_pad - B), (0, 0)))

    if divisible:
        R = frame_size // shift
        nchunks = nframes + R - 1                            # sig_length == nchunks * shift
        g_align = 128 // math.gcd(shift, 128)                # chunks per 128-lane-aligned group
        group = min(g_align, nchunks)
        while group * shift < _TARGET_LANES and group + g_align <= nchunks:
            group += g_align
        kernel = _make_ola_gather_kernel(shift, nframes, frame_size, nchunks, group)
        scratch_shapes = ()
    else:
        kernel = _make_ola_scatter_kernel(shift, nframes, frame_size, sig_length)
        scratch_shapes = (pltpu.VMEM((TB, sig_length), jnp.float32),)

    # TODO(synk): for very long signals add a second grid axis tiling sig_length so the
    # output block stays bounded independently of the batch tile.
    out = pl.pallas_call(
        kernel,
        out_shape=jax.ShapeDtypeStruct((B_pad, sig_length), inputs.dtype),
        grid=(B_pad // TB,),
        in_specs=[
            pl.BlockSpec((TB, nframes * frame_size), lambda b: (b, 0)),
            pl.BlockSpec((1, sig_length), lambda b: (0, 0)),
        ],
        out_specs=pl.BlockSpec((TB, sig_length), lambda b: (b, 0)),
        scratch_shapes=scratch_shapes,
        compiler_params=pltpu.CompilerParams(
            dimension_semantics=("parallel",),
            vmem_limit_bytes=_VMEM_LIMIT_BYTES,
        ),
    )(x, inv_cnt)

    out = out[:B].reshape(*lead, sig_length)
    return out


def _reference(inputs, frame_shift):
    """Pure-JAX mirror of the PyTorch TorchOLA.forward for verification."""
    nframes, frame_size = inputs.shape[-2], inputs.shape[-1]
    sig_length = (nframes - 1) * frame_shift + frame_size
    sig = jnp.zeros(inputs.shape[:-2] + (sig_length,), inputs.dtype)
    ones = jnp.zeros_like(sig)
    for i in range(nframes):
        s = i * frame_shift
        sig = sig.at[..., s:s + frame_size].add(inputs[..., i, :])
        ones = ones.at[..., s:s + frame_size].add(1.0)
    return sig / ones


if __name__ == "__main__":
    key = jax.random.PRNGKey(0)
    k1, k2 = jax.random.split(key)

    # Config 1: small shapes consistent with the module (frames of 32 hopped by 16).
    batch, channels, nframes, frame_size, frame_shift = 2, 4, 8, 32, 16
    x = jax.random.normal(k1, (batch, channels, nframes, frame_size), dtype=jnp.float32)
    out = jax.block_until_ready(torch_ola(x, frame_shift=frame_shift))
    sig_length = (nframes - 1) * frame_shift + frame_size
    assert out.shape == (batch, channels, sig_length), out.shape
    ref = _reference(x, frame_shift)
    err = float(jnp.max(jnp.abs(out - ref)))
    assert jnp.allclose(out, ref, atol=1e-5, rtol=1e-5), f"max_err={err}"

    # Config 2: lane-aligned hop (the TSTNN default 512/256 ratio, scaled-down batch).
    nframes2, frame_size2, frame_shift2 = 6, 512, 256
    x2 = jax.random.normal(k2, (2, 3, nframes2, frame_size2), dtype=jnp.float32)
    out2 = jax.block_until_ready(torch_ola(x2, frame_shift=frame_shift2))
    ref2 = _reference(x2, frame_shift2)
    err2 = float(jnp.max(jnp.abs(out2 - ref2)))
    assert jnp.allclose(out2, ref2, atol=1e-5, rtol=1e-5), f"max_err={err2}"

    print("KERNEL_OK")
</pallas_src>

<mosaic_0001>
module attributes {stable_mosaic.version = 11 : i64} {
  func.func @kernel(%arg0: i32, %arg1: memref<8x256xf32, #tpu.memory_space<vmem>>, %arg2: memref<1x144xf32, #tpu.memory_space<vmem>>, %arg3: memref<8x144xf32, #tpu.memory_space<vmem>>) attributes {dimension_semantics = [#tpu.dimension_semantics<parallel>], iteration_bounds = array<i64: 1>, scalar_prefetch = 0 : i64, scratch_operands = 0 : i64, tpu.core_type = #tpu.core_type<tc>, window_params = [{transform_indices = @transform_0, window_bounds = array<i64: 8, 256>}, {pipeline_mode = #tpu.pipeline_mode<synchronous>, transform_indices = @transform_1, window_bounds = array<i64: 1, 144>}, {transform_indices = @transform_2, window_bounds = array<i64: 8, 144>}]} {
    %c0 = arith.constant 0 : index
    %c0_0 = arith.constant 0 : index
    %0 = vector.load %arg1[%c0, %c0_0] : memref<8x256xf32, #tpu.memory_space<vmem>>, vector<8x16xf32>
    %c0_1 = arith.constant 0 : index
    %c32 = arith.constant 32 : index
    %1 = vector.load %arg1[%c0_1, %c32] : memref<8x256xf32, #tpu.memory_space<vmem>>, vector<8x16xf32>
    %c0_2 = arith.constant 0 : index
    %c16 = arith.constant 16 : index
    %2 = vector.load %arg1[%c0_2, %c16] : memref<8x256xf32, #tpu.memory_space<vmem>>, vector<8x16xf32>
    %3 = arith.addf %1, %2 : vector<8x16xf32>
    %c0_3 = arith.constant 0 : index
    %c64 = arith.constant 64 : index
    %4 = vector.load %arg1[%c0_3, %c64] : memref<8x256xf32, #tpu.memory_space<vmem>>, vector<8x16xf32>
    %c0_4 = arith.constant 0 : index
    %c48 = arith.constant 48 : index
    %5 = vector.load %arg1[%c0_4, %c48] : memref<8x256xf32, #tpu.memory_space<vmem>>, vector<8x16xf32>
    %6 = arith.addf %4, %5 : vector<8x16xf32>
    %c0_5 = arith.constant 0 : index
    %c96 = arith.constant 96 : index
    %7 = vector.load %arg1[%c0_5, %c96] : memref<8x256xf32, #tpu.memory_space<vmem>>, vector<8x16xf32>
    %c0_6 = arith.constant 0 : index
    %c80 = arith.constant 80 : index
    %8 = vector.load %arg1[%c0_6, %c80] : memref<8x256xf32, #tpu.memory_space<vmem>>, vector<8x16xf32>
    %9 = arith.addf %7, %8 : vector<8x16xf32>
    %c0_7 = arith.constant 0 : index
    %c128 = arith.constant 128 : index
    %10 = vector.load %arg1[%c0_7, %c128] : memref<8x256xf32, #tpu.memory_space<vmem>>, vector<8x16xf32>
    %c0_8 = arith.constant 0 : index
    %c112 = arith.constant 112 : index
    %11 = vector.load %arg1[%c0_8, %c112] : memref<8x256xf32, #tpu.memory_space<vmem>>, vector<8x16xf32>
    %12 = arith.addf %10, %11 : vector<8x16xf32>
    %c0_9 = arith.constant 0 : index
    %c160 = arith.constant 160 : index
    %13 = vector.load %arg1[%c0_9, %c160] : memref<8x256xf32, #tpu.memory_space<vmem>>, vector<8x16xf32>
    %c0_10 = arith.constant 0 : index
    %c144 = arith.constant 144 : index
    %14 = vector.load %arg1[%c0_10, %c144] : memref<8x256xf32, #tpu.memory_space<vmem>>, vector<8x16xf32>
    %15 = arith.addf %13, %14 : vector<8x16xf32>
    %c0_11 = arith.constant 0 : index
    %c192 = arith.constant 192 : index
    %16 = vector.load %arg1[%c0_11, %c192] : memref<8x256xf32, #tpu.memory_space<vmem>>, vector<8x16xf32>
    %c0_12 = arith.constant 0 : index
    %c176 = arith.constant 176 : index
    %17 = vector.load %arg1[%c0_12, %c176] : memref<8x256xf32, #tpu.memory_space<vmem>>, vector<8x16xf32>
    %18 = arith.addf %16, %17 : vector<8x16xf32>
    %c0_13 = arith.constant 0 : index
    %c224 = arith.constant 224 : index
    %19 = vector.load %arg1[%c0_13, %c224] : memref<8x256xf32, #tpu.memory_space<vmem>>, vector<8x16xf32>
    %c0_14 = arith.constant 0 : index
    %c208 = arith.constant 208 : index
    %20 = vector.load %arg1[%c0_14, %c208] : memref<8x256xf32, #tpu.memory_space<vmem>>, vector<8x16xf32>
    %21 = arith.addf %19, %20 : vector<8x16xf32>
    %22 = tpu.concatenate %0, %3, %6, %9, %12, %15, %18, %21 in 1 : vector<8x16xf32>, vector<8x16xf32>, vector<8x16xf32>, vector<8x16xf32>, vector<8x16xf32>, vector<8x16xf32>, vector<8x16xf32>, vector<8x16xf32> -> vector<8x128xf32>
    %c0_15 = arith.constant 0 : index
    %c0_16 = arith.constant 0 : index
    %23 = vector.load %arg2[%c0_15, %c0_16] : memref<1x144xf32, #tpu.memory_space<vmem>>, vector<1x128xf32>
    %24 = vector.broadcast %23 : vector<1x128xf32> to vector<8x128xf32>
    %25 = arith.mulf %22, %24 : vector<8x128xf32>
    %c0_17 = arith.constant 0 : index
    %c0_18 = arith.constant 0 : index
    %26 = vector.load %arg3[%c0_17, %c0_18] : memref<8x144xf32, #tpu.memory_space<vmem>>, vector<8x128xf32>
    tpu.vector_store %arg3[%c0_17, %c0_18], %25 {strides = array<i32>} : memref<8x144xf32, #tpu.memory_space<vmem>>, vector<8x128xf32>,
    %c0_19 = arith.constant 0 : index
    %c240 = arith.constant 240 : index
    %27 = vector.load %arg1[%c0_19, %c240] : memref<8x256xf32, #tpu.memory_space<vmem>>, vector<8x16xf32>
    %c0_20 = arith.constant 0 : index
    %c128_21 = arith.constant 128 : index
    %28 = vector.load %arg2[%c0_20, %c128_21] : memref<1x144xf32, #tpu.memory_space<vmem>>, vector<1x16xf32>
    %29 = vector.broadcast %28 : vector<1x16xf32> to vector<8x16xf32>
    %30 = arith.mulf %27, %29 : vector<8x16xf32>
    %c0_22 = arith.constant 0 : index
    %c128_23 = arith.constant 128 : index
    %31 = vector.load %arg3[%c0_22, %c128_23] : memref<8x144xf32, #tpu.memory_space<vmem>>, vector<8x16xf32>
    tpu.vector_store %arg3[%c0_22, %c128_23], %30 {strides = array<i32>} : memref<8x144xf32, #tpu.memory_space<vmem>>, vector<8x16xf32>,
    return
  }
  func.func @transform_0(%arg0: i32) -> (i32, i32) {
    %c0_i32 = arith.constant 0 : i32
    %c0_i32_0 = arith.constant 0 : i32
    return %arg0, %c0_i32 : i32, i32
  }
  func.func @transform_1(%arg0: i32) -> (i32, i32) {
    %c0_i32 = arith.constant 0 : i32
    %c0_i32_0 = arith.constant 0 : i32
    %c0_i32_1 = arith.constant 0 : i32
    return %c0_i32, %c0_i32_0 : i32, i32
  }
  func.func @transform_2(%arg0: i32) -> (i32, i32) {
    %c0_i32 = arith.constant 0 : i32
    %c0_i32_0 = arith.constant 0 : i32
    return %arg0, %c0_i32 : i32, i32
  }
}

</mosaic_0001>

<llo_original>
// kernel: tpu_custom_call.1
$region0: #{tpu_custom_call.1}
  #allocation0 [shape = 'u32[]', space=smem, size = 0x4, offset = 0x4, fixed_abs, tag = 'smem constant byte address 0x4 - core index']
  #allocation1 [shape = 'u32[144,128]{1,0:T(1,128)}', space=vmem, size = 0x12000, scoped, tag = 'internal scratch']
  %s0 = inlined_call_operand.hbm [shape: f32[8,256], index: 0, kind: input, shape index: {}]
  %s1 = inlined_call_operand.hbm [shape: f32[1,144], index: 1, kind: input, shape index: {}]
  %s2 = inlined_call_operand.hbm [shape: f32[8,144], index: 2, kind: output, shape index: {}]
  %s3 = sld [smem:[#allocation0]]
  $region26: #{tpu_custom_call.1} parent=0
    _
  %s5 = ssub.s32 1, %s3
  %s6 = scalar_select 0, %s5, %s3
  $region1: #{tpu_custom_call.1} parent=0
    #allocation2 [shape = 'u8[8192]{0}', space=vmem, size = 0x2000, scoped, tag = 'input window, operand 0, single buffered']
    #allocation3 [shape = 's32[1]{0}', space=sflag, size = 0x4, scoped, tag = 'scoped memory for tpu_custom_call.1']
    #allocation4 [shape = 's32[1]{0}', space=sflag, size = 0x4, scoped, tag = 'scoped memory for tpu_custom_call.1']
    #allocation5 [shape = 'u8[1024]{0}', space=vmem, size = 0x400, scoped, tag = 'input window, operand 1, single buffered']
    #allocation6 [shape = 's32[1]{0}', space=sflag, size = 0x4, scoped, tag = 'scoped memory for tpu_custom_call.1']
    #allocation7 [shape = 'u8[8192]{0}', space=vmem, size = 0x2000, scoped, tag = 'output window, operand 0, single buffered']
    %7 = vsyncpa [#allocation3], 0
    %8 = vsyncpa [#allocation6], 0
    %9 = vsyncpa [#allocation4], 0
    // Predicated region
    $region2: #{tpu_custom_call.1} parent=1 // pred_check
      _
    $region3: #{tpu_custom_call.1} parent=1 // pred_check_branch
      %11 = sbr.rel (0) target = $region5
    $region4: #{tpu_custom_call.1} parent=1 // pred_region
      %s13 = ssub.s32 256, 256
      %14 = vsyncadd [#allocation3], %s13
      %s16 = sshll.u32 [#allocation2], 4
      %s17 = int_to_ptr.vmem [resolvable:$true] %s16
      %19 = dma.hbm_to_vmem [thread:$0]  %s0, 256, %s17, [#allocation3]
    $region5: #{tpu_custom_call.1} parent=1 // pred_fallthru
      _
    // Predicated region
    $region6: #{tpu_custom_call.1} parent=1 // pred_check
      _
    $region7: #{tpu_custom_call.1} parent=1 // pred_check_branch
      %21 = sbr.rel (0) target = $region9
    $region8: #{tpu_custom_call.1} parent=1 // pred_region
      %s23 = ssub.s32 32, 32
      %24 = vsyncadd [#allocation6], %s23
      %s26 = sshll.u32 [#allocation5], 4
      %s27 = int_to_ptr.vmem [resolvable:$true] %s26
      %29 = dma.hbm_to_vmem [thread:$0]  %s1, 32, %s27, [#allocation6]
    $region9: #{tpu_custom_call.1} parent=1 // pred_fallthru
      _
    // Predicated region
    $region10: #{tpu_custom_call.1} parent=1 // pred_check
      _
    $region11: #{tpu_custom_call.1} parent=1 // pred_check_branch
      %31 = sbr.rel (0) target = $region13
    $region12: #{tpu_custom_call.1} parent=1 // pred_region
      %32 = dma.done [#allocation3], 256
    $region13: #{tpu_custom_call.1} parent=1 // pred_fallthru
      _
    // Predicated region
    $region14: #{tpu_custom_call.1} parent=1 // pred_check
      _
    $region15: #{tpu_custom_call.1} parent=1 // pred_check_branch
      %34 = sbr.rel (0) target = $region17
    $region16: #{tpu_custom_call.1} parent=1 // pred_region
      %35 = dma.done [#allocation6], 32
    $region17: #{tpu_custom_call.1} parent=1 // pred_fallthru
      _
    %v36 = vld [vmem:[#allocation2] sm:$0xff]
    %38 = vrot.lane.b32.xlu0 %v36, 16
    %v39 = vpop.permute.xlu0 %38
    %v41 = vadd.f32 %v36, %v39
    %v42 = vld [vmem:[#allocation2 + $0x8] sm:$0xff]
    %v43 = vadd.f32 %v42, %v39
    %45 = vrot.lane.b32.xlu0 %v42, 16
    %v46 = vpop.permute.xlu0 %45
    %v48 = vadd.f32 %v42, %v46
    %50 = vrot.lane.b32.xlu0 %v41, 112
    %v51 = vpop.permute.xlu0 %50
    %53 = vrot.lane.b32.xlu0 %v41, 96
    %v54 = vpop.permute.xlu0 %53
    %56 = vrot.lane.b32.xlu0 %v41, 80
    %v57 = vpop.permute.xlu0 %56
    %60 = vrot.lane.b32.xlu0 %v43, 64
    %v61 = vpop.permute.xlu0 %60
    %64 = vrot.lane.b32.xlu0 %v48, 48
    %v65 = vpop.permute.xlu0 %64
    %67 = vrot.lane.b32.xlu0 %v48, 32
    %v68 = vpop.permute.xlu0 %67
    %70 = vrot.lane.b32.xlu0 %v48, 16
    %v71 = vpop.permute.xlu0 %70
    %vm73 = vcmask 130048
    %v74 = vsel %vm73, %v36, %v51
    %vm75 = vcmask 261120
    %v76 = vsel %vm75, %v74, %v54
    %vm77 = vcmask 392192
    %v78 = vsel %vm77, %v76, %v57
    %vm79 = vcmask 523264
    %v80 = vsel %vm79, %v78, %v61
    %vm81 = vcmask 654336
    %v82 = vsel %vm81, %v80, %v65
    %vm83 = vcmask 785408
    %v84 = vsel %vm83, %v82, %v68
    %vm85 = vcmask 916480
    %v86 = vsel %vm85, %v84, %v71
    %v87 = vld [vmem:[#allocation5] sm:$0x1]
    %v89 = vlaneseq
    %v90 = vshrl.u32 %v89, 7
    %v91 = vsub.s32 0, %v90
    %v92 = vrot.slane %v87, %v91
    %v94 = vmul.f32 %v86, %v92
    %95 = vst [vmem:[#allocation7] sm:$0xff] %v94
    %v96 = vld [vmem:[#allocation2 + $0x8] sm:$0xff]
    %v97 = vld [vmem:[#allocation5 + $0x1] sm:$0x1]
    %v99 = vlaneseq
    %v100 = vshrl.u32 %v99, 7
    %v101 = vsub.s32 0, %v100
    %v102 = vrot.slane %v97, %v101
    %103 = vrot.lane.b32.xlu0 %v102, 112
    %v104 = vpop.permute.xlu0 %103
    %v106 = vmul.f32 %v96, %v104
    %108 = vrot.lane.b32.xlu0 %v106, 16
    %v109 = vpop.permute.xlu0 %108
    %111 = vst.msk [vmem:[#allocation7 + $0x8] sm:$0xff] %vm73, %v109
    // Predicated region
    $region18: #{tpu_custom_call.1} parent=1 // pred_check
      _
    $region19: #{tpu_custom_call.1} parent=1 // pred_check_branch
      %113 = sbr.rel (0) target = $region21
    $region20: #{tpu_custom_call.1} parent=1 // pred_region
      %s115 = ssub.s32 256, 256
      %116 = vsyncadd [#allocation4], %s115
      %s118 = sshll.u32 [#allocation7], 4
      %s119 = int_to_ptr.vmem [resolvable:$true] %s118
      %121 = dma.vmem_to_hbm [thread:$0]  %s119, 256, %s2, [#allocation4]
    $region21: #{tpu_custom_call.1} parent=1 // pred_fallthru
      _
    // Predicated region
    $region22: #{tpu_custom_call.1} parent=1 // pred_check
      _
    $region23: #{tpu_custom_call.1} parent=1 // pred_check_branch
      %123 = sbr.rel (0) target = $region25
    $region24: #{tpu_custom_call.1} parent=1 // pred_region
      %124 = dma.done [#allocation4], 256
    $region25: #{tpu_custom_call.1} parent=1 // pred_fallthru
      _
    %125 = vsyncpa [#allocation3], 1
    %126 = vsyncpa [#allocation6], 1
    %127 = vsyncpa [#allocation4], 1

</llo_original>
